<compile_context>
chip_gen: v7x
topology: tpu7x:2x2x1
jax: 0.10.0
libtpu: 0.0.40
codegen_flags: <defaults>
</compile_context>

<pallas_src>
import functools

import jax
import jax.numpy as jnp
import numpy as np
from jax.experimental import pallas as pl
from jax.experimental.pallas import tpu as pltpu

_VMEM_LIMIT = 64 * 1024 * 1024  # raise the 16/32 MiB default scoped VMEM


# -----------------------------------------------------------------------------
# Pallas kernels
# -----------------------------------------------------------------------------
def gn_stats_kernel(f_ref, o_ref, acc_ref):
    """Pass 1: per-channel sum / sum-of-squares over row tiles.

      f_ref  : (1, TILE, C)  rows of flattened T*H*W, C on lanes
      o_ref  : (1, 2, C)     [channel_sum, channel_sumsq], written on last tile
      acc_ref: (2, C) f32 scratch, persists across the row-tile grid axis
    """
    @pl.when(pl.program_id(1) == 0)
    def _():
        acc_ref[...] = jnp.zeros_like(acc_ref)

    f = f_ref[0].astype(jnp.float32)                 # accumulate stats in f32
    s = jnp.sum(f, axis=0, keepdims=True)            # (1, C)
    sq = jnp.sum(f * f, axis=0, keepdims=True)       # (1, C)
    acc_ref[...] += jnp.concatenate([s, sq], axis=0)

    @pl.when(pl.program_id(1) == pl.num_programs(1) - 1)
    def _():
        o_ref[0] = acc_ref[...].astype(o_ref.dtype)


def gn_apply_silu_kernel(f_ref, zq_ref, ss_ref, wy_ref, by_ref, wb_ref, bb_ref,
                         o_ref):
    """Pass 2: out = SiLU( (f*scale + shift) * (zq@Wy + by) + (zq@Wb + bb) ).

      f_ref : (1, TILE, C)   zq_ref : (1, TILE, Zc)
      ss_ref: (1, 2, C)      [per-channel scale, shift] (GN + affine folded)
    """
    f = f_ref[0]                                     # storage dtype
    scale = ss_ref[0, 0:1, :]                        # (1, C) f32
    shift = ss_ref[0, 1:2, :]
    zq = zq_ref[0]                                   # matmul operands uncast
    y = jnp.dot(zq, wy_ref[...], preferred_element_type=jnp.float32) + by_ref[...]
    bc = jnp.dot(zq, wb_ref[...], preferred_element_type=jnp.float32) + bb_ref[...]
    new_f = (f * scale + shift) * y + bc             # f32 via broadcasting
    o_ref[0] = (new_f * jax.nn.sigmoid(new_f)).astype(o_ref.dtype)


def conv3d_tap_kernel(*refs, H, W, fuse_residual):
    """3x3x3 conv, one (batch, output-frame, kt-tap) grid step.

    Input is kw-unfolded in the wrapper so every slice here is contiguous and
    each matmul has K = 3*Cin.

      x_ref  : (1, 1, H+2, W, 3*Cin)   padded frame t+kt (kw-unfolded)
      w_ref  : (1, 3, 3*Cin, Cout)     weight slice for tap kt
      b_ref  : (1, Cout)
      [res_ref (1,1,H*W,Cr), wsc_ref (Cr,Cout), bsc_ref (1,Cout)]  if fused
      o_ref  : (1, 1, H*W, Cout)
      acc_ref: (H*W, Cout) f32 scratch, accumulates over kt
    """
    if fuse_residual:
        x_ref, w_ref, b_ref, res_ref, wsc_ref, bsc_ref, o_ref, acc_ref = refs
    else:
        x_ref, w_ref, b_ref, o_ref, acc_ref = refs

    kt = pl.program_id(2)

    @pl.when(kt == 0)
    def _():
        acc_ref[...] = jnp.zeros_like(acc_ref)

    k3 = x_ref.shape[-1]                              # 3 * Cin
    acc = acc_ref[...]
    for kh in range(3):                               # leading-dim slices only
        lhs = x_ref[0, 0, kh:kh + H].reshape(H * W, k3)
        acc = acc + jnp.dot(lhs, w_ref[0, kh],
                            preferred_element_type=jnp.float32)
    acc_ref[...] = acc

    @pl.when(kt == pl.num_programs(2) - 1)
    def _():
        out = acc_ref[...] + b_ref[...].astype(jnp.float32)
        if fuse_residual:
            sc = jnp.dot(res_ref[0, 0], wsc_ref[...],
                         preferred_element_type=jnp.float32)
            out = out + sc + bsc_ref[...].astype(jnp.float32)
        o_ref[0, 0] = out.astype(o_ref.dtype)         # one lane-dense slab/frame


# -----------------------------------------------------------------------------
# Pallas wrappers
# -----------------------------------------------------------------------------
def spatial_norm_silu(f, zq, groups, gamma, beta, wy, by, wb, bb,
                      *, row_tile=512, eps=1e-6):
    """CogVideoXSpatialNorm3D + SiLU, two tiled passes.

      f : (B, THW, C)  zq : (B, THW, Zc)  (channels-last, spatial flattened)
    """
    B, THW, C = f.shape
    Zc = zq.shape[-1]

    tile = min(row_tile, ((THW + 7) // 8) * 8)        # multiple of 8 sublanes
    thw_pad = ((THW + tile - 1) // tile) * tile
    if thw_pad != THW:
        f_p = jnp.pad(f, ((0, 0), (0, thw_pad - THW), (0, 0)))
        zq_p = jnp.pad(zq, ((0, 0), (0, thw_pad - THW), (0, 0)))
    else:
        f_p, zq_p = f, zq
    n_tiles = thw_pad // tile

    # ---- pass 1: channel sums / sumsq -------------------------------------
    stats = pl.pallas_call(
        gn_stats_kernel,
        out_shape=jax.ShapeDtypeStruct((B, 2, C), jnp.float32),
        grid=(B, n_tiles),
        in_specs=[pl.BlockSpec((1, tile, C), lambda b, i: (b, i, 0))],
        out_specs=pl.BlockSpec((1, 2, C), lambda b, i: (b, 0, 0)),
        scratch_shapes=[pltpu.VMEM((2, C), jnp.float32)],
        compiler_params=pltpu.CompilerParams(
            dimension_semantics=("parallel", "arbitrary"),
            vmem_limit_bytes=_VMEM_LIMIT),
    )(f_p)

    # ---- fold group stats + affine into per-channel scale/shift (tiny) ----
    cpg = C // groups
    n = float(cpg * THW)                              # zero-padded rows add 0
    s_g = stats[:, 0].reshape(B, groups, cpg).sum(-1)
    sq_g = stats[:, 1].reshape(B, groups, cpg).sum(-1)
    mean_g = s_g / n
    var_g = jnp.maximum(sq_g / n - mean_g * mean_g, 0.0)   # guard cancellation
    inv_g = jax.lax.rsqrt(var_g + eps)
    mean_c = jnp.repeat(mean_g, cpg, axis=-1)         # (B, C)
    inv_c = jnp.repeat(inv_g, cpg, axis=-1)
    scale = inv_c * gamma[None, :]
    shift = beta[None, :] - mean_c * scale
    ss = jnp.stack([scale, shift], axis=1).astype(jnp.float32)   # (B, 2, C)

    # ---- pass 2: normalize, modulate, SiLU ---------------------------------
    out = pl.pallas_call(
        gn_apply_silu_kernel,
        out_shape=jax.ShapeDtypeStruct((B, thw_pad, C), f.dtype),
        grid=(B, n_tiles),
        in_specs=[
            pl.BlockSpec((1, tile, C), lambda b, i: (b, i, 0)),
            pl.BlockSpec((1, tile, Zc), lambda b, i: (b, i, 0)),
            pl.BlockSpec((1, 2, C), lambda b, i: (b, 0, 0)),
            pl.BlockSpec((Zc, C), lambda b, i: (0, 0)),
            pl.BlockSpec((1, C), lambda b, i: (0, 0)),
            pl.BlockSpec((Zc, C), lambda b, i: (0, 0)),
            pl.BlockSpec((1, C), lambda b, i: (0, 0)),
        ],
        out_specs=pl.BlockSpec((1, tile, C), lambda b, i: (b, i, 0)),
        compiler_params=pltpu.CompilerParams(
            dimension_semantics=("parallel", "parallel"),
            vmem_limit_bytes=_VMEM_LIMIT),
    )(f_p, zq_p, ss, wy, by.reshape(1, C), wb, bb.reshape(1, C))

    return out[:, :THW]


def cached_conv3d(x, w, b, res=None, wsc=None, bsc=None):
    """CachedConv3d(k=3, padding=(0,1,1)), empty cache; optional fused shortcut.

      x   : (B, T, H, W, Cin) channels-last
      w   : torch layout (Cout, Cin, 3, 3, 3),  b: (Cout,)
      res : (B, T, H, W, Cr) residual (fused  res @ wsc + bsc  into epilogue)
    returns (B, T, H*W, Cout)
    """
    B, T, H, W, Cin = x.shape
    Cout = w.shape[0]

    # Temporal replicate-pad (empty cache) + spatial zero pad (padding=(0,1,1)).
    xp = jnp.concatenate([x[:, :1], x[:, :1], x], axis=1)
    xp = jnp.pad(xp, ((0, 0), (0, 0), (1, 1), (1, 1), (0, 0)))
    Hp = H + 2
    # kw-unfold: lane-contiguous shifted copies -> (B, T+2, H+2, W, 3*Cin).
    xkw = jnp.concatenate([xp[:, :, :, kw:kw + W, :] for kw in range(3)],
                          axis=-1)
    # Weights: (Cout,Cin,kt,kh,kw) -> (kt, kh, kw*Cin, Cout); K merged over kw.
    wt = jnp.transpose(w, (2, 3, 4, 1, 0)).reshape(3, 3, 3 * Cin, Cout)
    b2 = b.reshape(1, Cout)

    fuse = res is not None
    in_specs = [
        pl.BlockSpec((1, 1, Hp, W, 3 * Cin),
                     lambda bb, t, kt: (bb, t + kt, 0, 0, 0)),
        pl.BlockSpec((1, 3, 3 * Cin, Cout), lambda bb, t, kt: (kt, 0, 0, 0)),
        pl.BlockSpec((1, Cout), lambda bb, t, kt: (0, 0)),
    ]
    args = [xkw, wt, b2]
    if fuse:
        Cr = res.shape[-1]
        args += [res.reshape(B, T, H * W, Cr), wsc, bsc.reshape(1, Cout)]
        in_specs += [
            pl.BlockSpec((1, 1, H * W, Cr), lambda bb, t, kt: (bb, t, 0, 0)),
            pl.BlockSpec((Cr, Cout), lambda bb, t, kt: (0, 0)),
            pl.BlockSpec((1, Cout), lambda bb, t, kt: (0, 0)),
        ]

    return pl.pallas_call(
        functools.partial(conv3d_tap_kernel, H=H, W=W, fuse_residual=fuse),
        out_shape=jax.ShapeDtypeStruct((B, T, H * W, Cout), x.dtype),
        grid=(B, T, 3),
        in_specs=in_specs,
        out_specs=pl.BlockSpec((1, 1, H * W, Cout),
                               lambda bb, t, kt: (bb, t, 0, 0)),
        scratch_shapes=[pltpu.VMEM((H * W, Cout), jnp.float32)],
        compiler_params=pltpu.CompilerParams(
            dimension_semantics=("parallel", "parallel", "arbitrary"),
            vmem_limit_bytes=_VMEM_LIMIT),
    )(*args)


# -----------------------------------------------------------------------------
# JAX glue: zq nearest interpolation (matches torch F.interpolate mode='nearest')
# -----------------------------------------------------------------------------
def nearest_interp_3d(x, size):
    _, _, t, h, w = x.shape
    Td, Hd, Wd = size
    ti = (jnp.arange(Td) * t) // Td
    hi = (jnp.arange(Hd) * h) // Hd
    wi = (jnp.arange(Wd) * w) // Wd
    return x[:, :, ti][:, :, :, hi][:, :, :, :, wi]


def prepare_zq(zq, f_thw):
    T, H, W = f_thw
    if T > 1 and T % 2 == 1:
        z_first = nearest_interp_3d(zq[:, :, :1], (1, H, W))
        z_rest = nearest_interp_3d(zq[:, :, 1:], (T - 1, H, W))
        return jnp.concatenate([z_first, z_rest], axis=2)
    return nearest_interp_3d(zq, (T, H, W))


# -----------------------------------------------------------------------------
# Resnet3DBlock forward (Pallas path)
# -----------------------------------------------------------------------------
def resnet3d_block_forward(hidden_states, zq, p, groups, row_tile=512):
    B, Cin, T, H, W = hidden_states.shape
    Cout = p["conv1_w"].shape[0]
    Zc = zq.shape[1]
    THW = T * H * W

    zq_up = prepare_zq(zq, (T, H, W))                             # (B, Zc, T, H, W)
    zq_flat = zq_up.transpose(0, 2, 3, 4, 1).reshape(B, THW, Zc)

    x = hidden_states.transpose(0, 2, 3, 4, 1)                    # (B, T, H, W, Cin)
    res_flat = x.reshape(B, THW, Cin)

    # norm1 (spatial norm) + SiLU
    h = spatial_norm_silu(
        res_flat, zq_flat, groups, p["gamma1"], p["beta1"],
        p["cy1_w"].reshape(Cin, Zc).T, p["cy1_b"],
        p["cb1_w"].reshape(Cin, Zc).T, p["cb1_b"], row_tile=row_tile)
    # conv1 (CachedConv3d)
    h = cached_conv3d(h.reshape(B, T, H, W, Cin), p["conv1_w"], p["conv1_b"])
    # norm2 + SiLU
    h = spatial_norm_silu(
        h.reshape(B, THW, Cout), zq_flat, groups, p["gamma2"], p["beta2"],
        p["cy2_w"].reshape(Cout, Zc).T, p["cy2_b"],
        p["cb2_w"].reshape(Cout, Zc).T, p["cb2_b"], row_tile=row_tile)
    # conv2 (CachedConv3d) with fused 1x1x1 conv_shortcut + residual add
    h = cached_conv3d(h.reshape(B, T, H, W, Cout), p["conv2_w"], p["conv2_b"],
                      res=x, wsc=p["sc_w"].reshape(Cout, Cin).T, bsc=p["sc_b"])
    return h.reshape(B, T, H, W, Cout).transpose(0, 4, 1, 2, 3)   # back to NCDHW


# -----------------------------------------------------------------------------
# Pure-JAX reference (for numerical check)
# -----------------------------------------------------------------------------
def ref_forward(hidden_states, zq, p, groups):
    def group_norm(x, gamma, beta):
        B, C, T, H, W = x.shape
        xg = x.reshape(B, groups, C // groups, T, H, W)
        mean = xg.mean(axis=(2, 3, 4, 5), keepdims=True)
        var = ((xg - mean) ** 2).mean(axis=(2, 3, 4, 5), keepdims=True)
        xn = ((xg - mean) / jnp.sqrt(var + 1e-6)).reshape(B, C, T, H, W)
        return xn * gamma.reshape(1, -1, 1, 1, 1) + beta.reshape(1, -1, 1, 1, 1)

    def conv3d(x, w, b, padding):
        out = jax.lax.conv_general_dilated(
            x, w, (1, 1, 1), padding,
            dimension_numbers=("NCDHW", "OIDHW", "NCDHW"))
        return out + b.reshape(1, -1, 1, 1, 1)

    def cached_conv(x, w, b):
        x = jnp.concatenate([x[:, :, :1], x[:, :, :1], x], axis=2)
        return conv3d(x, w, b, ((0, 0), (1, 1), (1, 1)))

    def spatial_norm(f, zqx, gamma, beta, wy, by, wb, bb):
        zq_up = prepare_zq(zqx, f.shape[2:])
        nf = group_norm(f, gamma, beta)
        return (nf * conv3d(zq_up, wy, by, ((0, 0),) * 3)
                + conv3d(zq_up, wb, bb, ((0, 0),) * 3))

    silu = jax.nn.silu
    res = hidden_states
    h = spatial_norm(hidden_states, zq, p["gamma1"], p["beta1"],
                     p["cy1_w"], p["cy1_b"], p["cb1_w"], p["cb1_b"])
    h = silu(h)
    h = cached_conv(h, p["conv1_w"], p["conv1_b"])
    h = spatial_norm(h, zq, p["gamma2"], p["beta2"],
                     p["cy2_w"], p["cy2_b"], p["cb2_w"], p["cb2_b"])
    h = silu(h)
    h = cached_conv(h, p["conv2_w"], p["conv2_b"])
    sc = conv3d(res, p["sc_w"], p["sc_b"], ((0, 0),) * 3)
    return h + sc


# -----------------------------------------------------------------------------
if __name__ == "__main__":
    B, Cin, Cout, T, H, W = 2, 8, 16, 3, 8, 8   # T odd & >1 exercises the zq split
    Zc, Tz, Hz, Wz = 4, 3, 4, 4                 # zq smaller spatially -> interpolation
    groups = 2

    key = jax.random.PRNGKey(0)
    ks = jax.random.split(key, 20)

    def rnd(k, shape, scale=0.1):
        return jax.random.normal(k, shape, jnp.float32) * scale

    params = {
        # norm1 (CogVideoXSpatialNorm3D on Cin channels)
        "gamma1": 1.0 + rnd(ks[0], (Cin,), 0.05),
        "beta1": rnd(ks[1], (Cin,), 0.05),
        "cy1_w": rnd(ks[2], (Cin, Zc, 1, 1, 1)),
        "cy1_b": rnd(ks[3], (Cin,)),
        "cb1_w": rnd(ks[4], (Cin, Zc, 1, 1, 1)),
        "cb1_b": rnd(ks[5], (Cin,)),
        # norm2 (on Cout channels)
        "gamma2": 1.0 + rnd(ks[6], (Cout,), 0.05),
        "beta2": rnd(ks[7], (Cout,), 0.05),
        "cy2_w": rnd(ks[8], (Cout, Zc, 1, 1, 1)),
        "cy2_b": rnd(ks[9], (Cout,)),
        "cb2_w": rnd(ks[10], (Cout, Zc, 1, 1, 1)),
        "cb2_b": rnd(ks[11], (Cout,)),
        # conv1 / conv2 (CachedConv3d, kernel 3, padding (0,1,1))
        "conv1_w": rnd(ks[12], (Cout, Cin, 3, 3, 3)),
        "conv1_b": rnd(ks[13], (Cout,)),
        "conv2_w": rnd(ks[14], (Cout, Cout, 3, 3, 3)),
        "conv2_b": rnd(ks[15], (Cout,)),
        # conv_shortcut (1x1x1, since Cin != Cout, use_conv_shortcut=False)
        "sc_w": rnd(ks[16], (Cout, Cin, 1, 1, 1)),
        "sc_b": rnd(ks[17], (Cout,)),
    }

    hidden_states = rnd(ks[18], (B, Cin, T, H, W), 1.0)
    zq = rnd(ks[19], (B, Zc, Tz, Hz, Wz), 1.0)

    out = resnet3d_block_forward(hidden_states, zq, params, groups)
    out = jax.block_until_ready(out)
    assert out.shape == (B, Cout, T, H, W)

    ref = jax.block_until_ready(ref_forward(hidden_states, zq, params, groups))
    np.testing.assert_allclose(np.asarray(out), np.asarray(ref),
                               rtol=2e-3, atol=2e-3)
    print("KERNEL_OK")
</pallas_src>

<mosaic_0001>
module attributes {stable_mosaic.version = 11 : i64} {
  func.func @gn_stats_kernel(%arg0: i32, %arg1: i32, %arg2: memref<1x192x8xf32, #tpu.memory_space<vmem>>, %arg3: memref<1x2x8xf32, #tpu.memory_space<vmem>>, %arg4: memref<2x8xf32, #tpu.memory_space<vmem>>) attributes {dimension_semantics = [#tpu.dimension_semantics<parallel>, #tpu.dimension_semantics<arbitrary>], iteration_bounds = array<i64: 2, 1>, scalar_prefetch = 0 : i64, scratch_operands = 1 : i64, tpu.core_type = #tpu.core_type<tc>, window_params = [{transform_indices = @transform_0, window_bounds = array<i64: 1, 192, 8>}, {transform_indices = @transform_1, window_bounds = array<i64: 1, 2, 8>}]} {
    %c0_i32 = arith.constant 0 : i32
    %0 = arith.cmpi eq, %arg1, %c0_i32 : i32
    %1 = arith.extui %0 : i1 to i32
    %c0_i32_0 = arith.constant 0 : i32
    %2 = arith.cmpi ne, %1, %c0_i32_0 : i32
    scf.if %2 {
      %cst_10 = arith.constant 0.000000e+00 : f32
      %17 = vector.broadcast %cst_10 : f32 to vector<2x8xf32>
      %c0_11 = arith.constant 0 : index
      %c0_12 = arith.constant 0 : index
      %18 = vector.load %arg4[%c0_11, %c0_12] : memref<2x8xf32, #tpu.memory_space<vmem>>, vector<2x8xf32>
      tpu.vector_store %arg4[%c0_11, %c0_12], %17 {strides = array<i32>} : memref<2x8xf32, #tpu.memory_space<vmem>>, vector<2x8xf32>,
    } else {
    }
    %c0 = arith.constant 0 : index
    %c0_1 = arith.constant 0 : index
    %c0_2 = arith.constant 0 : index
    %3 = vector.load %arg2[%c0, %c0_1, %c0_2] : memref<1x192x8xf32, #tpu.memory_space<vmem>>, vector<1x192x8xf32>
    %4 = vector.shape_cast %3 : vector<1x192x8xf32> to vector<192x8xf32>
    %cst = arith.constant dense<0.000000e+00> : vector<8xf32>
    %5 = vector.multi_reduction <add>, %4, %cst [0] : vector<192x8xf32> to vector<8xf32>
    %6 = vector.shape_cast %5 : vector<8xf32> to vector<1x8xf32>
    %7 = arith.mulf %4, %4 : vector<192x8xf32>
    %cst_3 = arith.constant dense<0.000000e+00> : vector<8xf32>
    %8 = vector.multi_reduction <add>, %7, %cst_3 [0] : vector<192x8xf32> to vector<8xf32>
    %9 = vector.shape_cast %8 : vector<8xf32> to vector<1x8xf32>
    %c0_4 = arith.constant 0 : index
    %c0_5 = arith.constant 0 : index
    %10 = vector.load %arg4[%c0_4, %c0_5] : memref<2x8xf32, #tpu.memory_space<vmem>>, vector<2x8xf32>
    %11 = tpu.concatenate %6, %9 in 0 : vector<1x8xf32>, vector<1x8xf32> -> vector<2x8xf32>
    %12 = arith.addf %10, %11 : vector<2x8xf32>
    %c0_6 = arith.constant 0 : index
    %c0_7 = arith.constant 0 : index
    %13 = vector.load %arg4[%c0_6, %c0_7] : memref<2x8xf32, #tpu.memory_space<vmem>>, vector<2x8xf32>
    tpu.vector_store %arg4[%c0_6, %c0_7], %12 {strides = array<i32>} : memref<2x8xf32, #tpu.memory_space<vmem>>, vector<2x8xf32>,
    %c0_i32_8 = arith.constant 0 : i32
    %14 = arith.cmpi eq, %arg1, %c0_i32_8 : i32
    %15 = arith.extui %14 : i1 to i32
    %c0_i32_9 = arith.constant 0 : i32
    %16 = arith.cmpi ne, %15, %c0_i32_9 : i32
    scf.if %16 {
      %c0_10 = arith.constant 0 : index
      %c0_11 = arith.constant 0 : index
      %17 = vector.load %arg4[%c0_10, %c0_11] : memref<2x8xf32, #tpu.memory_space<vmem>>, vector<2x8xf32>
      %c0_12 = arith.constant 0 : index
      %c0_13 = arith.constant 0 : index
      %c0_14 = arith.constant 0 : index
      %18 = vector.load %arg3[%c0_12, %c0_13, %c0_14] : memref<1x2x8xf32, #tpu.memory_space<vmem>>, vector<1x2x8xf32>
      %19 = vector.shape_cast %18 : vector<1x2x8xf32> to vector<2x8xf32>
      %20 = vector.shape_cast %17 : vector<2x8xf32> to vector<1x2x8xf32>
      tpu.vector_store %arg3[%c0_12, %c0_13, %c0_14], %20 {strides = array<i32>} : memref<1x2x8xf32, #tpu.memory_space<vmem>>, vector<1x2x8xf32>,
    } else {
    }
    return
  }
  func.func @transform_0(%arg0: i32, %arg1: i32) -> (i32, i32, i32) {
    %c0_i32 = arith.constant 0 : i32
    %c0_i32_0 = arith.constant 0 : i32
    return %arg0, %arg1, %c0_i32 : i32, i32, i32
  }
  func.func @transform_1(%arg0: i32, %arg1: i32) -> (i32, i32, i32) {
    %c0_i32 = arith.constant 0 : i32
    %c0_i32_0 = arith.constant 0 : i32
    %c0_i32_1 = arith.constant 0 : i32
    return %arg0, %c0_i32, %c0_i32_0 : i32, i32, i32
  }
}

</mosaic_0001>

<llo_original>
// kernel: tpu_custom_call.1
$region0: #{tpu_custom_call.1}
  #allocation0 [shape = 'u32[]', space=smem, size = 0x4, offset = 0x4, fixed_abs, tag = 'smem constant byte address 0x4 - core index']
  #allocation1 [shape = 'u32[144,128]{1,0:T(1,128)}', space=vmem, size = 0x12000, scoped, tag = 'internal scratch']
  #allocation2 [shape = 'f32[2,8]{1,0:T(2,128)}', space=vmem, size = 0x400, scoped, tag = 'scratch operand']
  %s0 = inlined_call_operand.hbm [shape: f32[2,192,8], index: 0, kind: input, shape index: {}]
  %s1 = inlined_call_operand.hbm [shape: f32[2,2,8], index: 1, kind: output, shape index: {}]
  %s2 = sld [smem:[#allocation0]]
  $region49: #{tpu_custom_call.1} parent=0
    _
  %s4 = ssub.s32 1, %s2
  %s5 = scalar_select 0, %s4, %s2
  $region1: #{tpu_custom_call.1} parent=0
    #allocation3 [shape = 'u8[196608]{0}', space=vmem, size = 0x30000, scoped, tag = 'input window, operand 0']
    #allocation4 [shape = 's32[2]{0}', space=sflag, size = 0x8, scoped, tag = 'scoped memory for tpu_custom_call.1']
    #allocation5 [shape = 's32[2]{0}', space=sflag, size = 0x8, scoped, tag = 'scoped memory for tpu_custom_call.1']
    #allocation6 [shape = 'u8[2048]{0}', space=vmem, size = 0x800, scoped, tag = 'output window, operand 0']
    %6 = vsyncpa [#allocation4], 0
    %s7 = scalar_lea.sflag [#allocation4], 1
    %8 = vsyncpa %s7, 0
    %9 = vsyncpa [#allocation5], 0
    %s10 = scalar_lea.sflag [#allocation5], 1
    %11 = vsyncpa %s10, 0
    loop: start=0, step=1, limit=4
    $region2: #{tpu_custom_call.1} parent=1 // loop_pre_header
      _
    $region3: #{tpu_custom_call.1} parent=1 // loop_header
      %s13 = sphi 0, %s17
      %p14 = scmp.ge.s32.totalorder %s13, 4
      %s20 = sphi 0, %s32
      %s21 = sphi 0, %s28
      %s22 = sphi 0, %s20
      %s23 = sphi 0, %s21
      %s24 = sphi 0, %s22
      %s25 = sphi 0, %s23
      %s37 = sphi 0, %s39
      %s40 = sphi 0, %s37
      %s41 = sphi 0, %s40
      %s57 = sphi 0, %s41
      %s63 = sphi 0, %s65
      %s66 = sphi 0, %s63
      %s67 = sphi 0, %s66
      %s83 = sphi 0, %s67
    $region4: #{tpu_custom_call.1} parent=1 // loop_header_branch
      %16 = sbr.rel (%p14) target = $region8
    $region5: #{tpu_custom_call.1} parent=1 // loop_body
      %s18 = ssub.s32 %s13, 1
      %s19 = ssub.s32 %s13, 2
      %s26 = sadd.s32 1, %s21
      %p27 = scmp.ge.s32.totalorder %s26, 1
      %s28 = scalar_select %p27, 0, %s26
      %s29 = sadd.s32 1, %s20
      %s30 = scalar_select %p27, %s29, %s20
      %p31 = scmp.ge.s32.totalorder %s30, 2
      %s32 = scalar_select %p31, 0, %s30
      %s33 = ssub.s32 %s20, %s32
      %s34 = ssub.s32 %s21, %s28
      %s35 = sor.u32 %s33, %s34
      %p36 = scmp.eq.s32.totalorder %s35, 0
      %s38 = sadd.s32 %s37, 1
      %s39 = scalar_select %p36, %s37, %s38
      %p42 = pneg %p36
      %p43 = scmp.eq.s32.totalorder %s13, 1
      %p44 = por %p42, %p43
      %p45 = scmp.ne.s32.totalorder %s37, %s40
      %p46 = scmp.eq.s32.totalorder %s13, 0
      %p47 = por %p45, %p46
      %p48 = scmp.ne.s32.totalorder %s37, %s40
      %p49 = scmp.eq.s32.totalorder %s18, 1
      %p50 = por %p48, %p49
      %p51 = scmp.ne.s32.totalorder %s40, %s41
      %p52 = scmp.eq.s32.totalorder %s18, 0
      %p53 = por %p51, %p52
      %p54 = scmp.ne.s32.totalorder %s40, %s41
      %p55 = scmp.eq.s32.totalorder %s19, 1
      %p56 = por %p54, %p55
      %p58 = scmp.ne.s32.totalorder %s41, %s57
      %p59 = scmp.eq.s32.totalorder %s19, 0
      %p60 = por %p58, %p59
      %s61 = ssub.s32 %s20, %s32
      %p62 = scmp.eq.s32.totalorder %s61, 0
      %s64 = sadd.s32 %s63, 1
      %s65 = scalar_select %p62, %s63, %s64
      %p68 = pneg %p62
      %p69 = scmp.eq.s32.totalorder %s13, 1
      %p70 = por %p68, %p69
      %p71 = scmp.ne.s32.totalorder %s63, %s66
      %p72 = scmp.eq.s32.totalorder %s13, 0
      %p73 = por %p71, %p72
      %p74 = scmp.ne.s32.totalorder %s63, %s66
      %p75 = scmp.eq.s32.totalorder %s18, 1
      %p76 = por %p74, %p75
      %p77 = scmp.ne.s32.totalorder %s66, %s67
      %p78 = scmp.eq.s32.totalorder %s18, 0
      %p79 = por %p77, %p78
      %p80 = scmp.ne.s32.totalorder %s66, %s67
      %p81 = scmp.eq.s32.totalorder %s19, 1
      %p82 = por %p80, %p81
      %p84 = scmp.ne.s32.totalorder %s67, %s83
      %p85 = scmp.eq.s32.totalorder %s19, 0
      %p86 = por %p84, %p85
      %p87 = scmp.le.s32.totalorder 1, %s13
      %p88 = scmp.lt.s32.totalorder %s13, 3
      %p89 = pnand %p87, %p88
      %p90 = pneg %p89
      // Predicated region
      $region9: #{tpu_custom_call.1} parent=5 // pred_check
        _
      $region10: #{tpu_custom_call.1} parent=5 // pred_check_branch
        %92 = sbr.rel (%p89) target = $region12
      $region11: #{tpu_custom_call.1} parent=5 // pred_region
        %s93 = ssub.s32 %s13, 1
      $region12: #{tpu_custom_call.1} parent=5 // pred_fallthru
        _
      %p94 = scmp.lt.s32.totalorder %s13, 2
      // Predicated region
      $region13: #{tpu_custom_call.1} parent=5 // pred_check
        %p95 = pneg %p94
      $region14: #{tpu_custom_call.1} parent=5 // pred_check_branch
        %97 = sbr.rel (%p95) target = $region16
      $region15: #{tpu_custom_call.1} parent=5 // pred_region
        // Predicated region
        $region17: #{tpu_custom_call.1} parent=15 // pred_check
          %p98 = pneg %p47
        $region18: #{tpu_custom_call.1} parent=15 // pred_check_branch
          %100 = sbr.rel (%p98) target = $region20
        $region19: #{tpu_custom_call.1} parent=15 // pred_region
          %s101 = sand.u32 %s37, 1
          %s102 = scalar_lea.sflag [#allocation4], %s101
          %s103 = sand.u32 %s37, 1
          %s104 = smul.addr %s103, 192
          %s105 = scalar_lea.vmem [#allocation3], %s104
          %s106 = smul.u32 24, %s21
          %s108 = ssub.s32 3072, 3072
          %109 = vsyncadd %s102, %s108
          %s110 = smul.addr %s20, 24
          %s111 = sadd.s32 %s106, %s110
          %s112 = smul.addr %s111, 128
          %s113 = scalar_lea.hbm %s0, %s112
          %s114 = sshll.u32 %s105, 4
          %s115 = int_to_ptr.vmem [resolvable:$true] %s114
          %120 = dma.hbm_to_vmem [thread:$0]  %s113, 3072, %s115, %s102, 128, 128, 8
        $region20: #{tpu_custom_call.1} parent=15 // pred_fallthru
          _
      $region16: #{tpu_custom_call.1} parent=5 // pred_fallthru
        _
      %p121 = scmp.le.s32.totalorder 1, %s13
      %p122 = scmp.lt.s32.totalorder %s13, 3
      %p123 = pnand %p121, %p122
      %p124 = pneg %p123
      // Predicated region
      $region21: #{tpu_custom_call.1} parent=5 // pred_check
        _
      $region22: #{tpu_custom_call.1} parent=5 // pred_check_branch
        %126 = sbr.rel (%p123) target = $region24
      $region23: #{tpu_custom_call.1} parent=5 // pred_region
        %s127 = ssub.s32 %s13, 1
        %s128 = sand.u32 %s40, 1
        %s129 = scalar_lea.sflag [#allocation4], %s128
        %s130 = sand.u32 %s40, 1
        %s131 = smul.addr %s130, 192
        %s132 = scalar_lea.vmem [#allocation3], %s131
        // Predicated region
        $region25: #{tpu_custom_call.1} parent=23 // pred_check
          %p133 = pneg %p53
        $region26: #{tpu_custom_call.1} parent=23 // pred_check_branch
          %135 = sbr.rel (%p133) target = $region28
        $region27: #{tpu_custom_call.1} parent=23 // pred_region
          %136 = dma.done %s129, 3072
        $region28: #{tpu_custom_call.1} parent=23 // pred_fallthru
          _
        %s137 = sand.u32 %s40, 1
        %s138 = scalar_lea.sflag [#allocation4], %s137
        %s139 = sand.u32 %s40, 1
        %s140 = smul.addr %s139, 192
        %s141 = scalar_lea.vmem [#allocation3], %s140
        %p142 = pneg %p53
        %p143 = pneg %p50
        %p144 = pneg %p79
        %p145 = pneg %p76
        %s146 = sand.u32 %s66, 1
        %s147 = scalar_lea.sflag [#allocation5], %s146
        %s148 = sand.u32 %s66, 1
        %s149 = smul.addr %s148, 2
        %s150 = scalar_lea.vmem [#allocation6], %s149
        %s151 = smul.u32 24, %s23
        %p152 = scmp.eq.s32.totalorder %s23, 0
        // Predicated region
        $region29: #{tpu_custom_call.1} parent=23 // pred_check
          %p153 = pneg %p152
        $region30: #{tpu_custom_call.1} parent=23 // pred_check_branch
          %155 = sbr.rel (%p153) target = $region32
        $region31: #{tpu_custom_call.1} parent=23 // pred_region
          %vm156 = vcmask 58368
          %157 = vst.msk [vmem:[#allocation2] sm:$0x3] %vm156, 0.0
        $region32: #{tpu_custom_call.1} parent=23 // pred_fallthru
          _
        %v158 = vld [vmem:[%s132] sm:$0xff]
        %v159 = vld [vmem:[%s132 + $0x8] sm:$0xff]
        %v160 = vld [vmem:[%s132 + $0x10] sm:$0xff]
        %v161 = vld [vmem:[%s132 + $0x18] sm:$0xff]
        %v162 = vld [vmem:[%s132 + $0x20] sm:$0xff]
        %v163 = vld [vmem:[%s132 + $0x28] sm:$0xff]
        %v164 = vld [vmem:[%s132 + $0x30] sm:$0xff]
        %v165 = vld [vmem:[%s132 + $0x38] sm:$0xff]
        %v166 = vld [vmem:[%s132 + $0x40] sm:$0xff]
        %v167 = vld [vmem:[%s132 + $0x48] sm:$0xff]
        %v168 = vld [vmem:[%s132 + $0x50] sm:$0xff]
        %v169 = vld [vmem:[%s132 + $0x58] sm:$0xff]
        %v170 = vld [vmem:[%s132 + $0x60] sm:$0xff]
        %v171 = vld [vmem:[%s132 + $0x68] sm:$0xff]
        %v172 = vld [vmem:[%s132 + $0x70] sm:$0xff]
        %v173 = vld [vmem:[%s132 + $0x78] sm:$0xff]
        %v174 = vld [vmem:[%s132 + $0x80] sm:$0xff]
        %v175 = vld [vmem:[%s132 + $0x88] sm:$0xff]
        %v176 = vld [vmem:[%s132 + $0x90] sm:$0xff]
        %v177 = vld [vmem:[%s132 + $0x98] sm:$0xff]
        %v178 = vld [vmem:[%s132 + $0xa0] sm:$0xff]
        %v179 = vld [vmem:[%s132 + $0xa8] sm:$0xff]
        %v180 = vld [vmem:[%s132 + $0xb0] sm:$0xff]
        %v181 = vld [vmem:[%s132 + $0xb8] sm:$0xff]
        %vm182 = vcmask 64512
        %v183 = vsel %vm182, %v158, 0.0
        %v184 = vsel %vm182, %v159, 0.0
        %v185 = vadd.f32 %v183, %v184
        %v186 = vsel %vm182, %v160, 0.0
        %v187 = vadd.f32 %v185, %v186
        %v188 = vsel %vm182, %v161, 0.0
        %v189 = vadd.f32 %v187, %v188
        %v190 = vsel %vm182, %v162, 0.0
        %v191 = vadd.f32 %v189, %v190
        %v192 = vsel %vm182, %v163, 0.0
        %v193 = vadd.f32 %v191, %v192
        %v194 = vsel %vm182, %v164, 0.0
        %v195 = vadd.f32 %v193, %v194
        %v196 = vsel %vm182, %v165, 0.0
        %v197 = vadd.f32 %v195, %v196
        %v198 = vsel %vm182, %v166, 0.0
        %v199 = vadd.f32 %v197, %v198
        %v200 = vsel %vm182, %v167, 0.0
        %v201 = vadd.f32 %v199, %v200
        %v202 = vsel %vm182, %v168, 0.0
        %v203 = vadd.f32 %v201, %v202
        %v204 = vsel %vm182, %v169, 0.0
        %v205 = vadd.f32 %v203, %v204
        %v206 = vsel %vm182, %v170, 0.0
        %v207 = vadd.f32 %v205, %v206
        %v208 = vsel %vm182, %v171, 0.0
        %v209 = vadd.f32 %v207, %v208
        %v210 = vsel %vm182, %v172, 0.0
        %v211 = vadd.f32 %v209, %v210
        %v212 = vsel %vm182, %v173, 0.0
        %v213 = vadd.f32 %v211, %v212
        %v214 = vsel %vm182, %v174, 0.0
        %v215 = vadd.f32 %v213, %v214
        %v216 = vsel %vm182, %v175, 0.0
        %v217 = vadd.f32 %v215, %v216
        %v218 = vsel %vm182, %v176, 0.0
        %v219 = vadd.f32 %v217, %v218
        %v220 = vsel %vm182, %v177, 0.0
        %v221 = vadd.f32 %v219, %v220
        %v222 = vsel %vm182, %v178, 0.0
        %v223 = vadd.f32 %v221, %v222
        %v224 = vsel %vm182, %v179, 0.0
        %v225 = vadd.f32 %v223, %v224
        %v226 = vsel %vm182, %v180, 0.0
        %v227 = vadd.f32 %v225, %v226
        %v228 = vsel %vm182, %v181, 0.0
        %v229 = vadd.f32 %v227, %v228
        %v230 = vrot.slane %v229, 4
        %v231 = vadd.f32 %v229, %v230
        %v232 = vrot.slane %v231, 2
        %v233 = vadd.f32 %v231, %v232
        %v234 = vrot.slane %v233, 1
        %v235 = vadd.f32 %v233, %v234
        %v236 = vmul.f32 %v158, %v158
        %v237 = vmul.f32 %v159, %v159
        %v238 = vmul.f32 %v160, %v160
        %v239 = vmul.f32 %v161, %v161
        %v240 = vmul.f32 %v162, %v162
        %v241 = vmul.f32 %v163, %v163
        %v242 = vmul.f32 %v164, %v164
        %v243 = vmul.f32 %v165, %v165
        %v244 = vmul.f32 %v166, %v166
        %v245 = vmul.f32 %v167, %v167
        %v246 = vmul.f32 %v168, %v168
        %v247 = vmul.f32 %v169, %v169
        %v248 = vmul.f32 %v170, %v170
        %v249 = vmul.f32 %v171, %v171
        %v250 = vmul.f32 %v172, %v172
        %v251 = vmul.f32 %v173, %v173
        %v252 = vmul.f32 %v174, %v174
        %v253 = vmul.f32 %v175, %v175
        %v254 = vmul.f32 %v176, %v176
        %v255 = vmul.f32 %v177, %v177
        %v256 = vmul.f32 %v178, %v178
        %v257 = vmul.f32 %v179, %v179
        %v258 = vmul.f32 %v180, %v180
        %v259 = vmul.f32 %v181, %v181
        %v260 = vsel %vm182, %v236, 0.0
        %v261 = vsel %vm182, %v237, 0.0
        %v262 = vadd.f32 %v260, %v261
        %v263 = vsel %vm182, %v238, 0.0
        %v264 = vadd.f32 %v262, %v263
        %v265 = vsel %vm182, %v239, 0.0
        %v266 = vadd.f32 %v264, %v265
        %v267 = vsel %vm182, %v240, 0.0
        %v268 = vadd.f32 %v266, %v267
        %v269 = vsel %vm182, %v241, 0.0
        %v270 = vadd.f32 %v268, %v269
        %v271 = vsel %vm182, %v242, 0.0
        %v272 = vadd.f32 %v270, %v271
        %v273 = vsel %vm182, %v243, 0.0
        %v274 = vadd.f32 %v272, %v273
        %v275 = vsel %vm182, %v244, 0.0
        %v276 = vadd.f32 %v274, %v275
        %v277 = vsel %vm182, %v245, 0.0
        %v278 = vadd.f32 %v276, %v277
        %v279 = vsel %vm182, %v246, 0.0
        %v280 = vadd.f32 %v278, %v279
        %v281 = vsel %vm182, %v247, 0.0
        %v282 = vadd.f32 %v280, %v281
        %v283 = vsel %vm182, %v248, 0.0
        %v284 = vadd.f32 %v282, %v283
        %v285 = vsel %vm182, %v249, 0.0
        %v286 = vadd.f32 %v284, %v285
        %v287 = vsel %vm182, %v250, 0.0
        %v288 = vadd.f32 %v286, %v287
        %v289 = vsel %vm182, %v251, 0.0
        %v290 = vadd.f32 %v288, %v289
        %v291 = vsel %vm182, %v252, 0.0
        %v292 = vadd.f32 %v290, %v291
        %v293 = vsel %vm182, %v253, 0.0
        %v294 = vadd.f32 %v292, %v293
        %v295 = vsel %vm182, %v254, 0.0
        %v296 = vadd.f32 %v294, %v295
        %v297 = vsel %vm182, %v255, 0.0
        %v298 = vadd.f32 %v296, %v297
        %v299 = vsel %vm182, %v256, 0.0
        %v300 = vadd.f32 %v298, %v299
        %v301 = vsel %vm182, %v257, 0.0
        %v302 = vadd.f32 %v300, %v301
        %v303 = vsel %vm182, %v258, 0.0
        %v304 = vadd.f32 %v302, %v303
        %v305 = vsel %vm182, %v259, 0.0
        %v306 = vadd.f32 %v304, %v305
        %v307 = vrot.slane %v306, 4
        %v308 = vadd.f32 %v306, %v307
        %v309 = vrot.slane %v308, 2
        %v310 = vadd.f32 %v308, %v309
        %v311 = vrot.slane %v310, 1
        %v312 = vadd.f32 %v310, %v311
        %v313 = vld [vmem:[#allocation2] sm:$0x3]
        %vm314 = vcmask 1040384
        %v315 = vsel %vm314, %v235, %v312
        %v316 = vadd.f32 %v313, %v315
        %vm317 = vcmask 58368
        %318 = vst.msk [vmem:[#allocation2] sm:$0x3] %vm317, %v316
        // Predicated region
        $region33: #{tpu_custom_call.1} parent=23 // pred_check
          %p319 = pneg %p152
        $region34: #{tpu_custom_call.1} parent=23 // pred_check_branch
          %321 = sbr.rel (%p319) target = $region36
        $region35: #{tpu_custom_call.1} parent=23 // pred_region
          %v322 = vld [vmem:[#allocation2] sm:$0x3]
          %323 = vst.msk [vmem:[%s150] sm:$0x3] %vm317, %v322
        $region36: #{tpu_custom_call.1} parent=23 // pred_fallthru
          _
        %s324 = sand.u32 %s66, 1
        %s325 = scalar_lea.sflag [#allocation5], %s324
        %s326 = sand.u32 %s66, 1
        %s327 = smul.addr %s326, 2
        %s328 = scalar_lea.vmem [#allocation6], %s327
        // Predicated region
        $region37: #{tpu_custom_call.1} parent=23 // pred_check
          %p329 = pneg %p76
        $region38: #{tpu_custom_call.1} parent=23 // pred_check_branch
          %331 = sbr.rel (%p329) target = $region40
        $region39: #{tpu_custom_call.1} parent=23 // pred_region
          %s333 = ssub.s32 32, 32
          %334 = vsyncadd %s325, %s333
          %s335 = smul.addr %s22, 32
          %s336 = scalar_lea.hbm %s1, %s335
          %s338 = sshll.u32 %s328, 4
          %s339 = int_to_ptr.vmem [resolvable:$true] %s338
          %341 = dma.vmem_to_hbm [thread:$0]  %s339, 32, %s336, %s325
        $region40: #{tpu_custom_call.1} parent=23 // pred_fallthru
          _
      $region24: #{tpu_custom_call.1} parent=5 // pred_fallthru
        _
      %p342 = scmp.le.s32.totalorder 2, %s13
      // Predicated region
      $region41: #{tpu_custom_call.1} parent=5 // pred_check
        %p343 = pneg %p342
      $region42: #{tpu_custom_call.1} parent=5 // pred_check_branch
        %345 = sbr.rel (%p343) target = $region44
      $region43: #{tpu_custom_call.1} parent=5 // pred_region
        %s346 = ssub.s32 %s13, 2
        // Predicated region
        $region45: #{tpu_custom_call.1} parent=43 // pred_check
          %p347 = pneg %p82
        $region46: #{tpu_custom_call.1} parent=43 // pred_check_branch
          %349 = sbr.rel (%p347) target = $region48
        $region47: #{tpu_custom_call.1} parent=43 // pred_region
          %s350 = sand.u32 %s67, 1
          %s351 = scalar_lea.sflag [#allocation5], %s350
          %s352 = sand.u32 %s67, 1
          %s353 = smul.addr %s352, 2
          %s354 = scalar_lea.vmem [#allocation6], %s353
          %355 = dma.done %s351, 32
        $region48: #{tpu_custom_call.1} parent=43 // pred_fallthru
          _
      $region44: #{tpu_custom_call.1} parent=5 // pred_fallthru
        _
    $region6: #{tpu_custom_call.1} parent=1 // loop_footer
      %s17 = sadd.s32 1, %s13
    $region7: #{tpu_custom_call.1} parent=1 // loop_footer_branch
      %12 = sbr.rel target = $region3
    $region8: #{tpu_custom_call.1} parent=1 // loop_exit
      _
    %356 = vsyncpa [#allocation4], 1
    %s357 = scalar_lea.sflag [#allocation4], 1
    %358 = vsyncpa %s357, 1
    %359 = vsyncpa [#allocation5], 1
    %s360 = scalar_lea.sflag [#allocation5], 1
    %361 = vsyncpa %s360, 1

</llo_original>
